<compile_context>
chip_gen: v5e
topology: v5e:2x2
jax: 0.10.0
libtpu: 0.0.40
codegen_flags: <defaults>
</compile_context>

<pallas_src>
import jax
import jax.numpy as jnp
from jax import lax
from jax.experimental import pallas as pl
from jax.experimental.pallas import tpu as pltpu


# ---------------------------------------------------------------------------
# Kernel 1: batched input projection  i2h(x_t) + (bx + bh)  for all timesteps.
# ---------------------------------------------------------------------------
def i2h_kernel(x_ref, wx_ref, b_ref, out_ref):
    out_ref[...] = (jnp.dot(x_ref[...], wx_ref[...],
                            preferred_element_type=jnp.float32) + b_ref[...])


def precompute_i2h(x_tb, wx, bias):
    TB, _ = x_tb.shape
    G = wx.shape[1]
    vmem = pl.BlockSpec(memory_space=pltpu.MemorySpace.VMEM)
    return pl.pallas_call(
        i2h_kernel,
        out_shape=jax.ShapeDtypeStruct((TB, G), jnp.float32),
        in_specs=[vmem, vmem, vmem],
        out_specs=vmem,
    )(x_tb, wx, bias)


# ---------------------------------------------------------------------------
# Kernel 2: recurrent DND-LSTM + A2C head, time loop inside the kernel.
# ---------------------------------------------------------------------------
def dnd_lstm_step_kernel(h0_ref, c0_ref, px_ref, wh_ref,
                         keys_sc_ref, vals_ref,
                         w1_ref, b1_ref, wac_ref, bac_ref,
                         slab_ref, h_scr, c_scr):
    t = pl.program_id(1)
    H = h_scr.shape[1]
    A = wac_ref.shape[1] - 1        # last column of the fused head is the critic

    # Load the initial recurrent state for this batch shard at t == 0.
    @pl.when(t == 0)
    def _():
        h_scr[...] = h0_ref[...]
        c_scr[...] = c0_ref[...]

    h = h_scr[...]
    c = c_scr[...]

    # Only the serial h2h matmul lives in the loop; i2h(x)+bx+bh was hoisted.
    preact = px_ref[...] + jnp.dot(h, wh_ref[...],
                                   preferred_element_type=jnp.float32)

    gates = jax.nn.sigmoid(preact[:, :4 * H])            # (B, 4H) — one lane tile at H=32
    f_t = gates[:, 0:H]
    i_t = gates[:, H:2 * H]
    o_t = gates[:, 2 * H:3 * H]
    r_t = gates[:, 3 * H:4 * H]
    c_new = jnp.tanh(preact[:, 4 * H:])
    c_t = f_t * c + i_t * c_new

    # --- DND retrieval (mem_store='hidden' => q_t = h), cosine-similarity 1-NN
    # Keys are pre-transposed and pre-scaled by 1/||k|| (H, L) in the wrapper.
    # TODO(synk): DND.get_memory_non_embedder internals approximated as a cosine
    # nearest-neighbour lookup over a fixed key/value store (no in-episode writes).
    q = h
    q_inv = lax.rsqrt(jnp.maximum(jnp.sum(q * q, axis=-1, keepdims=True), 1e-16))
    sims = jnp.dot(q, keys_sc_ref[...], preferred_element_type=jnp.float32)   # (B, L)
    sims = sims * q_inv

    L = sims.shape[-1]
    max_sim = jnp.max(sims, axis=-1, keepdims=True)
    ids = lax.broadcasted_iota(jnp.int32, sims.shape, 1)
    best = jnp.min(jnp.where(sims >= max_sim, ids, L), axis=-1, keepdims=True)   # (B,1)
    onehot = (ids == best).astype(jnp.float32)
    mem = jnp.dot(onehot, vals_ref[...], preferred_element_type=jnp.float32)      # (B,H)
    m_t = jnp.tanh(mem)

    # emb_with_mem / epochs > 0 branch: gated memory added to cell state.
    c_t = c_t + r_t * m_t
    h_t = o_t * jnp.tanh(c_t)

    # --- A2C head on c_t: shared ReLU layer, fused actor+critic matmul ---------
    hid = jnp.maximum(
        jnp.dot(c_t, w1_ref[...], preferred_element_type=jnp.float32) + b1_ref[...], 0.0)
    head = jnp.dot(hid, wac_ref[...], preferred_element_type=jnp.float32) + bac_ref[...]
    logits = head[:, :A]
    v = head[:, A:A + 1]
    logits = logits - jnp.max(logits, axis=-1, keepdims=True)
    expl = jnp.exp(logits)
    denom = jnp.sum(expl, axis=-1, keepdims=True)
    pi = expl * pl.reciprocal(denom, approx=True)          # EUP reciprocal
    log_pi = logits - jnp.log(denom)                       # stable log-softmax
    entropy = -jnp.sum(pi * log_pi, axis=-1, keepdims=True)

    # Carry recurrent state to the next timestep.
    h_scr[...] = h_t
    c_scr[...] = c_t

    # --- Pack everything into one lane-dense output slab (width 256) ---------
    B = h_t.shape[0]
    base = 7 * H
    slab_ref[:, 0:H] = h_t
    slab_ref[:, H:2 * H] = c_t
    slab_ref[:, 2 * H:3 * H] = m_t
    slab_ref[:, 3 * H:7 * H] = gates
    slab_ref[:, base:base + A] = pi
    slab_ref[:, base + A:base + A + 1] = v
    slab_ref[:, base + A + 1:base + A + 2] = entropy
    slab_ref[:, base + A + 2:base + A + 3] = best.astype(jnp.float32)
    slab_ref[:, base + A + 3:base + 2 * A + 3] = log_pi
    pad = slab_ref.shape[-1] - (base + 2 * A + 3)
    slab_ref[:, base + 2 * A + 3:] = jnp.zeros((B, pad), jnp.float32)


def dnd_lstm_rollout(x_seq, h0, c0, params, mem_keys, mem_vals, *, batch_shards=2):
    """Run T recurrent DND-LSTM steps in a single pallas_call."""
    T, B, D = x_seq.shape
    H = h0.shape[1]
    A = params["wa"].shape[1]
    G = params["wx"].shape[1]          # 5 * H
    L = mem_keys.shape[0]
    HA = params["w1"].shape[1]
    assert B % batch_shards == 0
    Bp = B // batch_shards

    # Hoisted input projection over all timesteps; both biases folded in once.
    bias = params["bx"] + params["bh"]
    px = precompute_i2h(x_seq.reshape(T * B, D), params["wx"], bias).reshape(T, B, G)

    # Pre-transpose keys and fold the reciprocal key norms into them (only change
    # when a memory is written, which is not modelled here).
    inv_kn = lax.rsqrt(
        jnp.maximum(jnp.sum(mem_keys * mem_keys, axis=-1), 1e-16))             # (L,)
    keys_scaled_t = mem_keys.T * inv_kn[None, :]                               # (H, L)

    # Fuse actor + critic head into one matmul: columns [0:A] actor, [A] critic.
    w_ac = jnp.concatenate([params["wa"], params["wc"]], axis=1)               # (HA, A+1)
    b_ac = jnp.concatenate([params["ba"], params["bc"]], axis=1)               # (1, A+1)

    SLAB = 256                                   # round_up(7H + 2A + 3, 128)
    assert 7 * H + 2 * A + 3 <= SLAB

    def resident(shape):
        return pl.BlockSpec(shape, lambda p, t: (0, 0))

    grid_spec = pltpu.PrefetchScalarGridSpec(
        num_scalar_prefetch=0,
        grid=(batch_shards, T),
        in_specs=[
            pl.BlockSpec((Bp, H), lambda p, t: (p, 0)),             # h0 (per shard)
            pl.BlockSpec((Bp, H), lambda p, t: (p, 0)),             # c0 (per shard)
            pl.BlockSpec((None, Bp, G), lambda p, t: (t, p, 0)),    # precomputed i2h
            resident((H, G)),                                       # wh
            resident((H, L)),                                       # keys^T / ||k||
            resident((L, H)),                                       # vals
            resident((H, HA)),                                      # w1
            resident((1, HA)),                                      # b1
            resident((HA, A + 1)),                                  # fused wa|wc
            resident((1, A + 1)),                                   # fused ba|bc
        ],
        out_specs=pl.BlockSpec((None, Bp, SLAB), lambda p, t: (t, p, 0)),
        scratch_shapes=[pltpu.VMEM((Bp, H), jnp.float32),           # h state
                        pltpu.VMEM((Bp, H), jnp.float32)],          # c state
    )

    slab = pl.pallas_call(
        dnd_lstm_step_kernel,
        out_shape=jax.ShapeDtypeStruct((T, B, SLAB), jnp.float32),
        grid_spec=grid_spec,
        compiler_params=pltpu.CompilerParams(
            dimension_semantics=("parallel", "arbitrary")),
    )(h0, c0, px, params["wh"], keys_scaled_t, mem_vals,
      params["w1"], params["b1"], w_ac, b_ac)

    # Unpack the lane-dense slab in the wrapper.
    base = 7 * H
    h_t = slab[..., 0:H]
    c_t = slab[..., H:2 * H]
    m_t = slab[..., 2 * H:3 * H]
    gates = slab[..., 3 * H:7 * H]
    pi = slab[..., base:base + A]
    v = slab[..., base + A:base + A + 1]
    entropy = slab[..., base + A + 1:base + A + 2]
    best_id = slab[..., base + A + 2].astype(jnp.int32)
    log_pi = slab[..., base + A + 3:base + 2 * A + 3]
    return pi, v, entropy, h_t, c_t, m_t, gates, best_id, log_pi


def init_params(key, dim_input, dim_hidden, dim_hidden_a2c, n_actions):
    ks = jax.random.split(key, 10)
    scale = 0.1
    return {
        # i2h / h2h produce (N_GATES + 1) * H = 5H outputs; weights stored [in, out].
        "wx": jax.random.normal(ks[0], (dim_input, 5 * dim_hidden), jnp.float32) * scale,
        "bx": jnp.zeros((1, 5 * dim_hidden), jnp.float32),
        "wh": jax.random.normal(ks[1], (dim_hidden, 5 * dim_hidden), jnp.float32) * scale,
        "bh": jnp.zeros((1, 5 * dim_hidden), jnp.float32),
        # A2C: shared hidden layer, actor head, critic head.
        "w1": jax.random.normal(ks[2], (dim_hidden, dim_hidden_a2c), jnp.float32) * scale,
        "b1": jnp.zeros((1, dim_hidden_a2c), jnp.float32),
        "wa": jax.random.normal(ks[3], (dim_hidden_a2c, n_actions), jnp.float32) * scale,
        "ba": jnp.zeros((1, n_actions), jnp.float32),
        "wc": jax.random.normal(ks[4], (dim_hidden_a2c, 1), jnp.float32) * scale,
        "bc": jnp.zeros((1, 1), jnp.float32),
    }


if __name__ == "__main__":
    T = 8                    # rollout length (time loop runs inside the kernel)
    B = 16                   # batch of environments: multiple of 8 sublanes, 2 shards
    DIM_INPUT = 32
    DIM_HIDDEN = 32
    DIM_HIDDEN_A2C = 32
    N_ACTIONS = 4
    DICT_LEN = 8

    key = jax.random.PRNGKey(0)
    k_param, k_x, k_h, k_c, k_keys, k_vals, k_act = jax.random.split(key, 7)

    params = init_params(k_param, DIM_INPUT, DIM_HIDDEN, DIM_HIDDEN_A2C, N_ACTIONS)

    x_seq = jax.random.normal(k_x, (T, B, DIM_INPUT), jnp.float32)        # obs_bar_reward per step
    h0 = jax.random.normal(k_h, (B, DIM_HIDDEN), jnp.float32) * 0.1       # get_init_states
    c0 = jax.random.normal(k_c, (B, DIM_HIDDEN), jnp.float32) * 0.1
    mem_keys = jax.random.normal(k_keys, (DICT_LEN, DIM_HIDDEN), jnp.float32)
    mem_vals = jax.random.normal(k_vals, (DICT_LEN, DIM_HIDDEN), jnp.float32)

    pi, v, entropy, h_t, c_t, m_t, gates, best_id, log_pi = dnd_lstm_rollout(
        x_seq, h0, c0, params, mem_keys, mem_vals, batch_shards=2)

    # pick_action: sample from Categorical(pi) per step and compute log-prob (glue).
    a_t = jax.random.categorical(k_act, log_pi, axis=-1)                              # (T, B)
    log_prob_a_t = jnp.take_along_axis(log_pi, a_t[..., None], -1)[..., 0]

    outs = (pi, v, entropy, h_t, c_t, m_t, gates, best_id, a_t, log_prob_a_t)
    outs = jax.block_until_ready(outs)

    # basic sanity checks
    assert h_t.shape == (T, B, DIM_HIDDEN) and c_t.shape == (T, B, DIM_HIDDEN)
    assert pi.shape == (T, B, N_ACTIONS) and v.shape == (T, B, 1)
    assert bool(jnp.all(jnp.isfinite(pi))) and bool(jnp.all(jnp.isfinite(h_t)))
    assert bool(jnp.all(jnp.abs(jnp.sum(pi, axis=-1) - 1.0) < 1e-2))
    assert bool(jnp.all((best_id >= 0) & (best_id < DICT_LEN)))
    assert bool(jnp.all(jnp.abs(jnp.exp(log_pi) - pi) < 1e-3))

    print("KERNEL_OK")
</pallas_src>

<mosaic_0001>
module attributes {stable_mosaic.version = 11 : i64} {
  func.func @i2h_kernel(%arg0: memref<128x32xf32, #tpu.memory_space<vmem>>, %arg1: memref<32x160xf32, #tpu.memory_space<vmem>>, %arg2: memref<1x160xf32, #tpu.memory_space<vmem>>, %arg3: memref<128x160xf32, #tpu.memory_space<vmem>>) attributes {dimension_semantics = [], scalar_prefetch = 0 : i64, scratch_operands = 0 : i64, tpu.core_type = #tpu.core_type<tc>} {
    %c0 = arith.constant 0 : index
    %c0_0 = arith.constant 0 : index
    %0 = vector.load %arg0[%c0, %c0_0] : memref<128x32xf32, #tpu.memory_space<vmem>>, vector<128x32xf32>
    %c0_1 = arith.constant 0 : index
    %c0_2 = arith.constant 0 : index
    %1 = vector.load %arg1[%c0_1, %c0_2] : memref<32x160xf32, #tpu.memory_space<vmem>>, vector<32x160xf32>
    %cst = arith.constant dense<0.000000e+00> : vector<128x160xf32>
    %2 = tpu.matmul %0, %1, %cst {dimension_numbers = #tpu.dot_dimension_numbers<[1], [0], [0], [1], [0, 0, 1, 1], [], []>} : vector<128x32xf32>, vector<32x160xf32>, vector<128x160xf32> -> vector<128x160xf32>
    %c0_3 = arith.constant 0 : index
    %c0_4 = arith.constant 0 : index
    %3 = vector.load %arg2[%c0_3, %c0_4] : memref<1x160xf32, #tpu.memory_space<vmem>>, vector<1x160xf32>
    %4 = vector.broadcast %3 : vector<1x160xf32> to vector<128x160xf32>
    %5 = arith.addf %2, %4 : vector<128x160xf32>
    %c0_5 = arith.constant 0 : index
    %c0_6 = arith.constant 0 : index
    %6 = vector.load %arg3[%c0_5, %c0_6] : memref<128x160xf32, #tpu.memory_space<vmem>>, vector<128x160xf32>
    tpu.vector_store %arg3[%c0_5, %c0_6], %5 {strides = array<i32>} : memref<128x160xf32, #tpu.memory_space<vmem>>, vector<128x160xf32>,
    return
  }
}

</mosaic_0001>

<llo_original>
// kernel: tpu_custom_call.1
$region0: #{tpu_custom_call.1}
  #allocation0 [shape = 'u32[]', space=smem, size = 0x4, offset = 0x4, fixed_abs, tag = 'smem constant byte address 0x4 - core index']
  #allocation1 [shape = 'u32[72,128]{1,0:T(1,128)}', space=vmem, size = 0x9000, scoped, tag = 'internal scratch']
  %s0 = inlined_call_operand.vmem [shape: f32[128,32], index: 0, kind: input, shape index: {}]
  %s1 = inlined_call_operand.vmem [shape: f32[32,160], index: 1, kind: input, shape index: {}]
  %s2 = inlined_call_operand.vmem [shape: f32[1,160], index: 2, kind: input, shape index: {}]
  %s3 = inlined_call_operand.vmem [shape: f32[128,160], index: 3, kind: output, shape index: {}]
  %s4 = sld [smem:[#allocation0]]
  $region22: #{tpu_custom_call.1} parent=0
    _
  %s6 = ssub.s32 1, %s4
  %s7 = scalar_select 0, %s6, %s4
  // Predicated region
  $region2: #{tpu_custom_call.1} parent=0 // pred_check
    _
  $region3: #{tpu_custom_call.1} parent=0 // pred_check_branch
    %9 = sbr.rel (0) target = $region5
  $region4: #{tpu_custom_call.1} parent=0 // pred_region
    _
  $region5: #{tpu_custom_call.1} parent=0 // pred_fallthru
    _
  // Predicated region
  $region6: #{tpu_custom_call.1} parent=0 // pred_check
    _
  $region7: #{tpu_custom_call.1} parent=0 // pred_check_branch
    %11 = sbr.rel (0) target = $region9
  $region8: #{tpu_custom_call.1} parent=0 // pred_region
    _
  $region9: #{tpu_custom_call.1} parent=0 // pred_fallthru
    _
  // Predicated region
  $region10: #{tpu_custom_call.1} parent=0 // pred_check
    _
  $region11: #{tpu_custom_call.1} parent=0 // pred_check_branch
    %13 = sbr.rel (0) target = $region13
  $region12: #{tpu_custom_call.1} parent=0 // pred_region
    _
  $region13: #{tpu_custom_call.1} parent=0 // pred_fallthru
    _
  %v14 = vld [vmem:[%s0] sm:$0xff]
  %v15 = vld [vmem:[%s0 + $0x8] sm:$0xff]
  %v16 = vld [vmem:[%s0 + $0x10] sm:$0xff]
  %v17 = vld [vmem:[%s0 + $0x18] sm:$0xff]
  %v18 = vld [vmem:[%s0 + $0x20] sm:$0xff]
  %v19 = vld [vmem:[%s0 + $0x28] sm:$0xff]
  %v20 = vld [vmem:[%s0 + $0x30] sm:$0xff]
  %v21 = vld [vmem:[%s0 + $0x38] sm:$0xff]
  %v22 = vld [vmem:[%s0 + $0x40] sm:$0xff]
  %v23 = vld [vmem:[%s0 + $0x48] sm:$0xff]
  %v24 = vld [vmem:[%s0 + $0x50] sm:$0xff]
  %v25 = vld [vmem:[%s0 + $0x58] sm:$0xff]
  %v26 = vld [vmem:[%s0 + $0x60] sm:$0xff]
  %v27 = vld [vmem:[%s0 + $0x68] sm:$0xff]
  %v28 = vld [vmem:[%s0 + $0x70] sm:$0xff]
  %v29 = vld [vmem:[%s0 + $0x78] sm:$0xff]
  %v30 = vld [vmem:[%s1] sm:$0xff]
  %v31 = vld [vmem:[%s1 + $0x8] sm:$0xff]
  %v32 = vld [vmem:[%s1 + $0x10] sm:$0xff]
  %v33 = vld [vmem:[%s1 + $0x18] sm:$0xff]
  %v34 = vld [vmem:[%s1 + $0x20] sm:$0xff]
  %v35 = vld [vmem:[%s1 + $0x28] sm:$0xff]
  %v36 = vld [vmem:[%s1 + $0x30] sm:$0xff]
  %v37 = vld [vmem:[%s1 + $0x38] sm:$0xff]
  %v38 = vld [vmem:[%s2] sm:$0x3]
  %v40 = vperm.slane %v38, 0
  %v41 = vperm.slane %v38, 1
  %vm44 = vcmask 261120
  %v46 = vsel %vm44, %v14, 0
  %v49 = vsel %vm44, %v15, 0
  %v52 = vsel %vm44, %v16, 0
  %v55 = vsel %vm44, %v17, 0
  %v58 = vsel %vm44, %v18, 0
  %v61 = vsel %vm44, %v19, 0
  %v64 = vsel %vm44, %v20, 0
  %v67 = vsel %vm44, %v21, 0
  %v70 = vsel %vm44, %v22, 0
  %v73 = vsel %vm44, %v23, 0
  %v76 = vsel %vm44, %v24, 0
  %v79 = vsel %vm44, %v25, 0
  %v82 = vsel %vm44, %v26, 0
  %v85 = vsel %vm44, %v27, 0
  %v88 = vsel %vm44, %v28, 0
  %v91 = vsel %vm44, %v29, 0
  %93 = vmatpush.msra.mxu0 0.0
  %94 = vmatpush.msra.mxu0 0.0
  %95 = vmatpush.msra.mxu0 0.0
  %96 = vmatpush.msra.mxu0 0.0
  %97 = vmatpush.msra.mxu0 0.0
  %98 = vmatpush.msra.mxu0 0.0
  %99 = vmatpush.msra.mxu0 0.0
  %100 = vmatpush.msra.mxu0 0.0
  %101 = vmatpush.msra.mxu0 0.0
  %102 = vmatpush.msra.mxu0 0.0
  %103 = vmatpush.msra.mxu0 0.0
  %104 = vmatpush.msra.mxu0 0.0
  %105 = vmatpush.msra.mxu0 %v36
  %106 = vmatpush.msra.mxu0 %v34
  %107 = vmatpush.msra.mxu0 %v32
  %108 = vmatpush.msra.mxu0 %v30
  %109 = vmatmul.f32.gmra.mxu0 %v46
  %v110 = vpop.f32.mrf.mxu0
  %v111 = vadd.f32 %v40, %v110
  %112 = vmatmul.f32.gmra.mxu0 %v49
  %v113 = vpop.f32.mrf.mxu0
  %v114 = vadd.f32 %v40, %v113
  %115 = vmatmul.f32.gmra.mxu0 %v52
  %v116 = vpop.f32.mrf.mxu0
  %v117 = vadd.f32 %v40, %v116
  %118 = vmatmul.f32.gmra.mxu0 %v55
  %v119 = vpop.f32.mrf.mxu0
  %v120 = vadd.f32 %v40, %v119
  %121 = vmatmul.f32.gmra.mxu0 %v58
  %v122 = vpop.f32.mrf.mxu0
  %v123 = vadd.f32 %v40, %v122
  %124 = vmatmul.f32.gmra.mxu0 %v61
  %v125 = vpop.f32.mrf.mxu0
  %v126 = vadd.f32 %v40, %v125
  %127 = vmatmul.f32.gmra.mxu0 %v64
  %v128 = vpop.f32.mrf.mxu0
  %v129 = vadd.f32 %v40, %v128
  %130 = vmatmul.f32.gmra.mxu0 %v67
  %v131 = vpop.f32.mrf.mxu0
  %v132 = vadd.f32 %v40, %v131
  %133 = vmatmul.f32.gmra.mxu0 %v70
  %v134 = vpop.f32.mrf.mxu0
  %v135 = vadd.f32 %v40, %v134
  %136 = vmatmul.f32.gmra.mxu0 %v73
  %v137 = vpop.f32.mrf.mxu0
  %v138 = vadd.f32 %v40, %v137
  %139 = vmatmul.f32.gmra.mxu0 %v76
  %v140 = vpop.f32.mrf.mxu0
  %v141 = vadd.f32 %v40, %v140
  %142 = vmatmul.f32.gmra.mxu0 %v79
  %v143 = vpop.f32.mrf.mxu0
  %v144 = vadd.f32 %v40, %v143
  %145 = vmatmul.f32.gmra.mxu0 %v82
  %v146 = vpop.f32.mrf.mxu0
  %v147 = vadd.f32 %v40, %v146
  %148 = vmatmul.f32.gmra.mxu0 %v85
  %v149 = vpop.f32.mrf.mxu0
  %v150 = vadd.f32 %v40, %v149
  %151 = vmatmul.f32.gmra.mxu0 %v88
  %v152 = vpop.f32.mrf.mxu0
  %v153 = vadd.f32 %v40, %v152
  %154 = vmatmul.f32.gmra.mxu0 %v91
  %v155 = vpop.f32.mrf.mxu0
  %v156 = vadd.f32 %v40, %v155
  %157 = vdwg.mxu0
  %158 = vmatpush.msra.mxu0 0.0
  %159 = vmatpush.msra.mxu0 0.0
  %160 = vmatpush.msra.mxu0 0.0
  %161 = vmatpush.msra.mxu0 0.0
  %162 = vmatpush.msra.mxu0 0.0
  %163 = vmatpush.msra.mxu0 0.0
  %164 = vmatpush.msra.mxu0 0.0
  %165 = vmatpush.msra.mxu0 0.0
  %166 = vmatpush.msra.mxu0 0.0
  %167 = vmatpush.msra.mxu0 0.0
  %168 = vmatpush.msra.mxu0 0.0
  %169 = vmatpush.msra.mxu0 0.0
  %170 = vmatpush.msra.mxu0 %v37
  %171 = vmatpush.msra.mxu0 %v35
  %172 = vmatpush.msra.mxu0 %v33
  %173 = vmatpush.msra.mxu0 %v31
  %174 = vmatmul.f32.gmra.mxu0 %v46
  %v175 = vpop.f32.mrf.mxu0
  %v176 = vadd.f32 %v41, %v175
  %177 = vmatmul.f32.gmra.mxu0 %v49
  %v178 = vpop.f32.mrf.mxu0
  %v179 = vadd.f32 %v41, %v178
  %180 = vmatmul.f32.gmra.mxu0 %v52
  %v181 = vpop.f32.mrf.mxu0
  %v182 = vadd.f32 %v41, %v181
  %183 = vmatmul.f32.gmra.mxu0 %v55
  %v184 = vpop.f32.mrf.mxu0
  %v185 = vadd.f32 %v41, %v184
  %186 = vmatmul.f32.gmra.mxu0 %v58
  %v187 = vpop.f32.mrf.mxu0
  %v188 = vadd.f32 %v41, %v187
  %189 = vmatmul.f32.gmra.mxu0 %v61
  %v190 = vpop.f32.mrf.mxu0
  %v191 = vadd.f32 %v41, %v190
  %192 = vmatmul.f32.gmra.mxu0 %v64
  %v193 = vpop.f32.mrf.mxu0
  %v194 = vadd.f32 %v41, %v193
  %195 = vmatmul.f32.gmra.mxu0 %v67
  %v196 = vpop.f32.mrf.mxu0
  %v197 = vadd.f32 %v41, %v196
  %198 = vmatmul.f32.gmra.mxu0 %v70
  %v199 = vpop.f32.mrf.mxu0
  %v200 = vadd.f32 %v41, %v199
  %201 = vmatmul.f32.gmra.mxu0 %v73
  %v202 = vpop.f32.mrf.mxu0
  %v203 = vadd.f32 %v41, %v202
  %204 = vmatmul.f32.gmra.mxu0 %v76
  %v205 = vpop.f32.mrf.mxu0
  %v206 = vadd.f32 %v41, %v205
  %207 = vmatmul.f32.gmra.mxu0 %v79
  %v208 = vpop.f32.mrf.mxu0
  %v209 = vadd.f32 %v41, %v208
  %210 = vmatmul.f32.gmra.mxu0 %v82
  %v211 = vpop.f32.mrf.mxu0
  %v212 = vadd.f32 %v41, %v211
  %213 = vmatmul.f32.gmra.mxu0 %v85
  %v214 = vpop.f32.mrf.mxu0
  %v215 = vadd.f32 %v41, %v214
  %216 = vmatmul.f32.gmra.mxu0 %v88
  %v217 = vpop.f32.mrf.mxu0
  %v218 = vadd.f32 %v41, %v217
  %219 = vmatmul.f32.gmra.mxu0 %v91
  %v220 = vpop.f32.mrf.mxu0
  %v221 = vadd.f32 %v41, %v220
  %222 = vdwg.mxu0
  %223 = vst [vmem:[%s3] sm:$0xff] %v111
  %224 = vst.msk [vmem:[%s3 + $0x8] sm:$0xff] %vm44, %v176
  %225 = vst [vmem:[%s3 + $0x10] sm:$0xff] %v114
  %226 = vst.msk [vmem:[%s3 + $0x18] sm:$0xff] %vm44, %v179
  %227 = vst [vmem:[%s3 + $0x20] sm:$0xff] %v117
  %228 = vst.msk [vmem:[%s3 + $0x28] sm:$0xff] %vm44, %v182
  %229 = vst [vmem:[%s3 + $0x30] sm:$0xff] %v120
  %230 = vst.msk [vmem:[%s3 + $0x38] sm:$0xff] %vm44, %v185
  %231 = vst [vmem:[%s3 + $0x40] sm:$0xff] %v123
  %232 = vst.msk [vmem:[%s3 + $0x48] sm:$0xff] %vm44, %v188
  %233 = vst [vmem:[%s3 + $0x50] sm:$0xff] %v126
  %234 = vst.msk [vmem:[%s3 + $0x58] sm:$0xff] %vm44, %v191
  %235 = vst [vmem:[%s3 + $0x60] sm:$0xff] %v129
  %236 = vst.msk [vmem:[%s3 + $0x68] sm:$0xff] %vm44, %v194
  %237 = vst [vmem:[%s3 + $0x70] sm:$0xff] %v132
  %238 = vst.msk [vmem:[%s3 + $0x78] sm:$0xff] %vm44, %v197
  %239 = vst [vmem:[%s3 + $0x80] sm:$0xff] %v135
  %240 = vst.msk [vmem:[%s3 + $0x88] sm:$0xff] %vm44, %v200
  %241 = vst [vmem:[%s3 + $0x90] sm:$0xff] %v138
  %242 = vst.msk [vmem:[%s3 + $0x98] sm:$0xff] %vm44, %v203
  %243 = vst [vmem:[%s3 + $0xa0] sm:$0xff] %v141
  %244 = vst.msk [vmem:[%s3 + $0xa8] sm:$0xff] %vm44, %v206
  %245 = vst [vmem:[%s3 + $0xb0] sm:$0xff] %v144
  %246 = vst.msk [vmem:[%s3 + $0xb8] sm:$0xff] %vm44, %v209
  %247 = vst [vmem:[%s3 + $0xc0] sm:$0xff] %v147
  %248 = vst.msk [vmem:[%s3 + $0xc8] sm:$0xff] %vm44, %v212
  %249 = vst [vmem:[%s3 + $0xd0] sm:$0xff] %v150
  %250 = vst.msk [vmem:[%s3 + $0xd8] sm:$0xff] %vm44, %v215
  %251 = vst [vmem:[%s3 + $0xe0] sm:$0xff] %v153
  %252 = vst.msk [vmem:[%s3 + $0xe8] sm:$0xff] %vm44, %v218
  %253 = vst [vmem:[%s3 + $0xf0] sm:$0xff] %v156
  %254 = vst.msk [vmem:[%s3 + $0xf8] sm:$0xff] %vm44, %v221
  // Predicated region
  $region14: #{tpu_custom_call.1} parent=0 // pred_check
    _
  $region15: #{tpu_custom_call.1} parent=0 // pred_check_branch
    %256 = sbr.rel (0) target = $region17
  $region16: #{tpu_custom_call.1} parent=0 // pred_region
    _
  $region17: #{tpu_custom_call.1} parent=0 // pred_fallthru
    _
  // Predicated region
  $region18: #{tpu_custom_call.1} parent=0 // pred_check
    _
  $region19: #{tpu_custom_call.1} parent=0 // pred_check_branch
    %258 = sbr.rel (0) target = $region21
  $region20: #{tpu_custom_call.1} parent=0 // pred_region
    _
  $region21: #{tpu_custom_call.1} parent=0 // pred_fallthru
    _

</llo_original>
